<compile_context>
chip_gen: v7x
topology: tpu7x:2x2x1
jax: 0.10.0
libtpu: 0.0.40
codegen_flags: <defaults>
</compile_context>

<pallas_src>
import functools

import jax
import jax.numpy as jnp
from jax.experimental import pallas as pl
from jax.experimental.pallas import tpu as pltpu

QMIN, QMAX = -128.0, 127.0


# ------------------------------ Pallas kernels ------------------------------

def _mm_bn_relu_quant_kernel(x_ref, w_ref, s_ref, b_ref, o_ref, *,
                             inv_act_scale):
    # 1x1 conv (matmul) + folded BN + ReLU + int8 quant -> bf16 integer codes.
    # x is the raw f32 block input: split into hi+lo bf16 in-VMEM so the MXU
    # runs two single-pass bf16 dots instead of a multi-pass f32 dot.
    x = x_ref[...]
    x_hi = x.astype(jnp.bfloat16)
    x_lo = (x - x_hi.astype(jnp.float32)).astype(jnp.bfloat16)
    w = w_ref[...]                                     # bf16 int8 weight codes
    y = jnp.dot(x_hi, w, preferred_element_type=jnp.float32)
    y = y + jnp.dot(x_lo, w, preferred_element_type=jnp.float32)
    y = jnp.maximum(y * s_ref[...] + b_ref[...], 0.0)  # f32 epilogue (v5e-safe)
    q = jnp.clip(jnp.round(y * inv_act_scale), QMIN, QMAX)
    o_ref[...] = q.astype(o_ref.dtype)


def _conv3x3_bn_relu_quant_kernel(*refs, stride, n_rows, row_w, inv_act_scale):
    # 3x3 conv as 3 tap dots (one per ky, K = 3*C) over the whole image of one
    # batch element.  Inputs are phase-separated, kx-gathered bf16 code slabs:
    # every access is a unit-stride slice with a static start (no strided ds).
    ph_refs = refs[:stride]
    w_ref, s_ref, b_ref, o_ref = refs[stride:]
    m = n_rows * row_w
    cout = o_ref.shape[-1]
    acc = jnp.zeros((m, cout), jnp.float32)
    for ky in range(3):                      # unrolled; static slice starts
        src = ph_refs[ky % stride]
        start = (ky // stride) * row_w
        x2d = src[0, pl.ds(start, m), :]     # (Ho*Wo, 3*C) bf16 codes
        acc = acc + jnp.dot(x2d, w_ref[ky],  # resident (3, 3C, Cout) weights
                            preferred_element_type=jnp.float32)
    y = jnp.maximum(acc * s_ref[...] + b_ref[...], 0.0)
    q = jnp.clip(jnp.round(y * inv_act_scale), QMIN, QMAX)
    o_ref[...] = q.astype(o_ref.dtype).reshape(o_ref.shape)


def _mm_bn_res_relu_quant_kernel(x_ref, w_ref, s_ref, b_ref, r_ref, o_ref, *,
                                 inv_act_scale):
    # conv3 + BN + identity residual (f32) + ReLU + quant -> bf16 codes.
    y = jnp.dot(x_ref[...], w_ref[...], preferred_element_type=jnp.float32)
    y = jnp.maximum(y * s_ref[...] + b_ref[...] + r_ref[...], 0.0)
    q = jnp.clip(jnp.round(y * inv_act_scale), QMIN, QMAX)
    o_ref[...] = q.astype(o_ref.dtype)


def _mm2_bn_res_relu_quant_kernel(x_ref, w_ref, s_ref, b_ref,
                                  xs_ref, wsc_ref, ssc_ref, bsc_ref, o_ref, *,
                                  inv_act_scale):
    # conv3 with the downsample shortcut conv FUSED: two bf16 dots share the
    # M tile and one BN + add + ReLU + quant epilogue (shortcut never hits HBM).
    t = jnp.dot(x_ref[...], w_ref[...], preferred_element_type=jnp.float32)
    t = t * s_ref[...] + b_ref[...]
    sc = jnp.dot(xs_ref[...], wsc_ref[...], preferred_element_type=jnp.float32)
    sc = sc * ssc_ref[...] + bsc_ref[...]
    y = jnp.maximum(t + sc, 0.0)
    q = jnp.clip(jnp.round(y * inv_act_scale), QMIN, QMAX)
    o_ref[...] = q.astype(o_ref.dtype)


# ------------------------------ kernel wrappers ------------------------------

def _pick_tm(m):
    # Largest 16-row-aligned tile (bf16 sublane packing) that divides M while
    # leaving >= 2 grid steps (megacore / v7x dual-TC); fall back to 1 step.
    # TODO(synk): make this VMEM-budget aware (+ N/K tiling) for large shapes.
    for tm in (512, 256, 128, 64, 32, 16):
        if m % tm == 0 and m // tm >= 2:
            return tm
    for tm in (512, 256, 128, 64, 32, 16, 8):
        if m % tm == 0:
            return tm
    return m


def mm_bn_relu_quant(x, w, scale, bias, act_scale):
    """conv1: (M,K) f32 @ (K,N) bf16 codes + BN + ReLU + quant -> bf16 codes."""
    M, K = x.shape
    N = w.shape[1]
    tm = _pick_tm(M)
    kern = functools.partial(_mm_bn_relu_quant_kernel,
                             inv_act_scale=float(1.0 / act_scale))
    return pl.pallas_call(
        kern,
        out_shape=jax.ShapeDtypeStruct((M, N), jnp.bfloat16),
        grid=(M // tm,),
        in_specs=[
            pl.BlockSpec((tm, K), lambda i: (i, 0)),
            pl.BlockSpec((K, N), lambda i: (0, 0)),
            pl.BlockSpec((1, N), lambda i: (0, 0)),
            pl.BlockSpec((1, N), lambda i: (0, 0)),
        ],
        out_specs=pl.BlockSpec((tm, N), lambda i: (i, 0)),
        compiler_params=pltpu.CompilerParams(dimension_semantics=("parallel",)),
    )(x, w, scale.reshape(1, N), bias.reshape(1, N))


def conv3x3_bn_relu_quant(phases, w_taps, scale, bias, act_scale, *,
                          stride, Ho, Wo):
    """Fused 3x3 conv + BN + ReLU + quant -> (N, Ho*Wo, Cout) bf16 codes.

    phases: list of (N, Pk*Wo, 3*C) bf16 code slabs (1 for stride=1, `stride`
            phases otherwise), already zero-padded and kx-tap-gathered.
    w_taps: (3, 3*C, Cout) bf16 integer weight codes, rows ordered (kx, c).
    """
    N = phases[0].shape[0]
    C3 = phases[0].shape[-1]
    Cout = w_taps.shape[-1]
    M = Ho * Wo
    kern = functools.partial(_conv3x3_bn_relu_quant_kernel,
                             stride=stride, n_rows=Ho, row_w=Wo,
                             inv_act_scale=float(1.0 / act_scale))
    in_specs = ([pl.BlockSpec((1, ph.shape[1], C3), lambda n: (n, 0, 0))
                 for ph in phases] +
                [pl.BlockSpec((3, C3, Cout), lambda n: (0, 0, 0)),   # resident
                 pl.BlockSpec((1, Cout), lambda n: (0, 0)),
                 pl.BlockSpec((1, Cout), lambda n: (0, 0))])
    return pl.pallas_call(
        kern,
        out_shape=jax.ShapeDtypeStruct((N, M, Cout), jnp.bfloat16),
        grid=(N,),
        in_specs=in_specs,
        out_specs=pl.BlockSpec((1, M, Cout), lambda n: (n, 0, 0)),
        compiler_params=pltpu.CompilerParams(dimension_semantics=("parallel",)),
    )(*phases, w_taps, scale.reshape(1, Cout), bias.reshape(1, Cout))


def mm_bn_res_relu_quant(x, w, scale, bias, res, act_scale):
    """conv3 + BN + identity residual + ReLU + quant -> bf16 codes."""
    M, K = x.shape
    N = w.shape[1]
    tm = _pick_tm(M)
    kern = functools.partial(_mm_bn_res_relu_quant_kernel,
                             inv_act_scale=float(1.0 / act_scale))
    return pl.pallas_call(
        kern,
        out_shape=jax.ShapeDtypeStruct((M, N), jnp.bfloat16),
        grid=(M // tm,),
        in_specs=[
            pl.BlockSpec((tm, K), lambda i: (i, 0)),
            pl.BlockSpec((K, N), lambda i: (0, 0)),
            pl.BlockSpec((1, N), lambda i: (0, 0)),
            pl.BlockSpec((1, N), lambda i: (0, 0)),
            pl.BlockSpec((tm, N), lambda i: (i, 0)),
        ],
        out_specs=pl.BlockSpec((tm, N), lambda i: (i, 0)),
        compiler_params=pltpu.CompilerParams(dimension_semantics=("parallel",)),
    )(x, w, scale.reshape(1, N), bias.reshape(1, N), res)


def mm2_bn_res_relu_quant(x, w, scale, bias, xs, wsc, ssc, bsc, act_scale):
    """conv3 + BN + fused downsample-shortcut conv + BN + ReLU + quant."""
    M, K = x.shape
    N = w.shape[1]
    Ks = xs.shape[1]
    tm = _pick_tm(M)
    kern = functools.partial(_mm2_bn_res_relu_quant_kernel,
                             inv_act_scale=float(1.0 / act_scale))
    return pl.pallas_call(
        kern,
        out_shape=jax.ShapeDtypeStruct((M, N), jnp.bfloat16),
        grid=(M // tm,),
        in_specs=[
            pl.BlockSpec((tm, K), lambda i: (i, 0)),
            pl.BlockSpec((K, N), lambda i: (0, 0)),
            pl.BlockSpec((1, N), lambda i: (0, 0)),
            pl.BlockSpec((1, N), lambda i: (0, 0)),
            pl.BlockSpec((tm, Ks), lambda i: (i, 0)),
            pl.BlockSpec((Ks, N), lambda i: (0, 0)),
            pl.BlockSpec((1, N), lambda i: (0, 0)),
            pl.BlockSpec((1, N), lambda i: (0, 0)),
        ],
        out_specs=pl.BlockSpec((tm, N), lambda i: (i, 0)),
        compiler_params=pltpu.CompilerParams(dimension_semantics=("parallel",)),
    )(x, w, scale.reshape(1, N), bias.reshape(1, N),
      xs, wsc, ssc.reshape(1, N), bsc.reshape(1, N))


# -------------------------------- glue (JAX) ---------------------------------

def quantize_weight(w):
    """Int8 per-tensor symmetric fake-quant: (fake_quant, codes, scale)."""
    s = jnp.maximum(jnp.max(jnp.abs(w)), 1e-8) / 127.0
    q = jnp.clip(jnp.round(w / s), QMIN, QMAX)
    return q * s, q, s


def bn_fold(gamma, beta, mean, var, eps=1e-5):
    s = gamma / jnp.sqrt(var + eps)
    return s.astype(jnp.float32), (beta - mean * s).astype(jnp.float32)


def init_params(key, in_planes, planes, stride):
    exp = 4
    ks = jax.random.split(key, 8)

    def conv_w(k, cout, cin, kh, kw):
        fan_in = cin * kh * kw
        w = jax.random.normal(k, (cout, cin, kh, kw), jnp.float32)
        wq, qi, ws = quantize_weight(w * (2.0 / fan_in) ** 0.5)
        return {"wq": wq, "qi": qi, "ws": ws}

    def bn_p(k, c):
        k1, k2, k3, k4 = jax.random.split(k, 4)
        gamma = 1.0 + 0.1 * jax.random.normal(k1, (c,), jnp.float32)
        beta = 0.1 * jax.random.normal(k2, (c,), jnp.float32)
        mean = 0.1 * jax.random.normal(k3, (c,), jnp.float32)
        var = 0.5 + 0.5 * jnp.abs(jax.random.normal(k4, (c,), jnp.float32))
        return bn_fold(gamma, beta, mean, var)

    p = {
        "w1": conv_w(ks[0], planes, in_planes, 1, 1),
        "bn1": bn_p(ks[1], planes),
        "w2": conv_w(ks[2], planes, planes, 3, 3),
        "bn2": bn_p(ks[3], planes),
        "w3": conv_w(ks[4], exp * planes, planes, 1, 1),
        "bn3": bn_p(ks[5], exp * planes),
    }
    if stride != 1 or in_planes != exp * planes:
        p["wsc"] = conv_w(ks[6], exp * planes, in_planes, 1, 1)
        p["bnsc"] = bn_p(ks[7], exp * planes)
    return p


def quant_bottleneck_forward(x_nchw, p, stride, act_scales, in_planes, planes):
    exp = 4
    N, C, H, W = x_nchw.shape
    a1, a2, a3 = (float(a) for a in act_scales)
    xh = jnp.transpose(x_nchw, (0, 2, 3, 1))           # NHWC, f32

    Ho = (H + 2 - 3) // stride + 1
    Wo = (W + 2 - 3) // stride + 1

    # conv1 (1x1) + bn1 + relu + quant -> bf16 integer codes
    s1, b1 = p["bn1"]
    w1 = p["w1"]["qi"][:, :, 0, 0].T.astype(jnp.bfloat16)
    s1_eff = s1 * p["w1"]["ws"]                         # fold weight scale
    q1 = mm_bn_relu_quant(xh.reshape(N * H * W, C), w1, s1_eff, b1, a1)
    q1 = q1.reshape(N, H, W, planes)

    # conv2 (3x3, stride, pad=1) + bn2 + relu + quant.
    # Pad + gather the 3 kx taps along channels and split H into `stride`
    # phases in plain JAX, so the kernel only does unit-stride slices.
    # TODO(synk): fold this pad/gather pass into the kernel to cut HBM traffic.
    xp = jnp.pad(q1, ((0, 0), (1, 1), (1, 1), (0, 0)))  # zero code == zero act
    xg = jnp.concatenate(
        [xp[:, :, kx:kx + stride * (Wo - 1) + 1:stride, :] for kx in range(3)],
        axis=-1)                                        # (N, Hp, Wo, 3*planes)
    phases = [xg[:, r::stride].reshape(N, -1, 3 * planes) for r in range(stride)]
    w2_taps = jnp.transpose(p["w2"]["qi"], (2, 3, 1, 0)) \
                 .reshape(3, 3 * planes, planes).astype(jnp.bfloat16)
    s2, b2 = p["bn2"]
    s2_eff = s2 * (a1 * p["w2"]["ws"])                  # fold act + weight scales
    q2 = conv3x3_bn_relu_quant(phases, w2_taps, s2_eff, b2, a2,
                               stride=stride, Ho=Ho, Wo=Wo)
    q2 = q2.reshape(N * Ho * Wo, planes)                # bf16 integer codes

    # conv3 (1x1) + bn3 + shortcut + relu + quant (shortcut fused in-kernel).
    w3 = p["w3"]["qi"][:, :, 0, 0].T.astype(jnp.bfloat16)
    s3, b3 = p["bn3"]
    s3_eff = s3 * (a2 * p["w3"]["ws"])
    use_sc = (stride != 1) or (in_planes != exp * planes)
    if use_sc:
        xs = xh[:, ::stride, ::stride, :].reshape(N * Ho * Wo, C) \
               .astype(jnp.bfloat16)                    # halve shortcut DMA
        wsc = p["wsc"]["qi"][:, :, 0, 0].T.astype(jnp.bfloat16)
        ssc, bsc = p["bnsc"]
        ssc_eff = ssc * p["wsc"]["ws"]
        codes = mm2_bn_res_relu_quant(q2, w3, s3_eff, b3,
                                      xs, wsc, ssc_eff, bsc, a3)
    else:
        res = xh.reshape(N * Ho * Wo, C)                # exact f32 identity add
        codes = mm_bn_res_relu_quant(q2, w3, s3_eff, b3, res, a3)

    # Final dequantization happens in the cheap transpose pass (codes exact).
    out = (codes.astype(jnp.float32) * a3).reshape(N, Ho, Wo, exp * planes)
    return jnp.transpose(out, (0, 3, 1, 2))             # back to NCHW


# ---------------------------- pure-JAX reference -----------------------------

def reference_forward(x, p, stride, act_scales, in_planes, planes):
    exp = 4

    def conv(x, w, s=1, pad=0):
        return jax.lax.conv_general_dilated(
            x, w, (s, s), [(pad, pad), (pad, pad)],
            dimension_numbers=("NCHW", "OIHW", "NCHW"))

    def bn(y, sb):
        s, b = sb
        return y * s[None, :, None, None] + b[None, :, None, None]

    def rq(y, s):
        y = jnp.maximum(y, 0.0)
        return jnp.clip(jnp.round(y / s), QMIN, QMAX) * s

    o = rq(bn(conv(x, p["w1"]["wq"]), p["bn1"]), act_scales[0])
    o = rq(bn(conv(o, p["w2"]["wq"], stride, 1), p["bn2"]), act_scales[1])
    o = bn(conv(o, p["w3"]["wq"]), p["bn3"])
    if stride != 1 or in_planes != exp * planes:
        sc = bn(conv(x, p["wsc"]["wq"], stride), p["bnsc"])
    else:
        sc = x
    return rq(o + sc, act_scales[2])


# ----------------------------------- main ------------------------------------

if __name__ == "__main__":
    key = jax.random.PRNGKey(0)
    act_scales = (0.05, 0.04, 0.05)
    configs = [
        # (in_planes, planes, stride, N, H, W)
        (8, 4, 2, 2, 8, 8),    # downsample block: fused quant-conv shortcut
        (16, 4, 1, 2, 8, 8),   # identity-shortcut block
    ]

    for idx, (in_planes, planes, stride, N, H, W) in enumerate(configs):
        kx_, kp_, key = jax.random.split(key, 3)
        x = jax.random.normal(kx_, (N, in_planes, H, W), jnp.float32)
        params = init_params(kp_, in_planes, planes, stride)

        out = quant_bottleneck_forward(x, params, stride, act_scales,
                                       in_planes, planes)
        out = jax.block_until_ready(out)
        ref = reference_forward(x, params, stride, act_scales,
                                in_planes, planes)

        Ho = (H + 2 - 3) // stride + 1
        assert out.shape == (N, 4 * planes, Ho, Ho), out.shape
        assert bool(jnp.all(jnp.isfinite(out)))
        # Compare in units of the final int8 quantization step: fake-quant
        # pipelines may disagree by a couple of steps where pre-quant values
        # land on rounding boundaries (bf16 operand packing of the shortcut).
        a3 = act_scales[2]
        code_diff = jnp.abs(jnp.round(out / a3) - jnp.round(ref / a3))
        max_d = float(jnp.max(code_diff))
        frac1 = float(jnp.mean((code_diff <= 1.0).astype(jnp.float32)))
        assert max_d <= 5.0, f"config {idx}: max code diff {max_d}"
        assert frac1 >= 0.9, f"config {idx}: only {frac1:.3f} within 1 code"

    print("KERNEL_OK")
</pallas_src>

<mosaic_0001>
module attributes {stable_mosaic.version = 11 : i64} {
  func.func @_mm_bn_relu_quant_kernel(%arg0: i32, %arg1: memref<64x8xf32, #tpu.memory_space<vmem>>, %arg2: memref<8x4xbf16, #tpu.memory_space<vmem>>, %arg3: memref<1x4xf32, #tpu.memory_space<vmem>>, %arg4: memref<1x4xf32, #tpu.memory_space<vmem>>, %arg5: memref<64x4xbf16, #tpu.memory_space<vmem>>) attributes {dimension_semantics = [#tpu.dimension_semantics<parallel>], iteration_bounds = array<i64: 2>, scalar_prefetch = 0 : i64, scratch_operands = 0 : i64, tpu.core_type = #tpu.core_type<tc>, window_params = [{transform_indices = @transform_0, window_bounds = array<i64: 64, 8>}, {pipeline_mode = #tpu.pipeline_mode<synchronous>, transform_indices = @transform_1, window_bounds = array<i64: 8, 4>}, {pipeline_mode = #tpu.pipeline_mode<synchronous>, transform_indices = @transform_2, window_bounds = array<i64: 1, 4>}, {pipeline_mode = #tpu.pipeline_mode<synchronous>, transform_indices = @transform_3, window_bounds = array<i64: 1, 4>}, {transform_indices = @transform_4, window_bounds = array<i64: 64, 4>}]} {
    %c0 = arith.constant 0 : index
    %c0_0 = arith.constant 0 : index
    %0 = vector.load %arg1[%c0, %c0_0] : memref<64x8xf32, #tpu.memory_space<vmem>>, vector<64x8xf32>
    %1 = arith.truncf %0 : vector<64x8xf32> to vector<64x8xbf16>
    %2 = arith.extf %1 : vector<64x8xbf16> to vector<64x8xf32>
    %3 = arith.subf %0, %2 : vector<64x8xf32>
    %4 = arith.truncf %3 : vector<64x8xf32> to vector<64x8xbf16>
    %c0_1 = arith.constant 0 : index
    %c0_2 = arith.constant 0 : index
    %5 = vector.load %arg2[%c0_1, %c0_2] : memref<8x4xbf16, #tpu.memory_space<vmem>>, vector<8x4xbf16>
    %cst = arith.constant dense<0.000000e+00> : vector<64x4xf32>
    %6 = tpu.matmul %1, %5, %cst {dimension_numbers = #tpu.dot_dimension_numbers<[1], [0], [0], [1], [0, 0, 1, 1], [], []>} : vector<64x8xbf16>, vector<8x4xbf16>, vector<64x4xf32> -> vector<64x4xf32>
    %cst_3 = arith.constant dense<0.000000e+00> : vector<64x4xf32>
    %7 = tpu.matmul %4, %5, %cst_3 {dimension_numbers = #tpu.dot_dimension_numbers<[1], [0], [0], [1], [0, 0, 1, 1], [], []>} : vector<64x8xbf16>, vector<8x4xbf16>, vector<64x4xf32> -> vector<64x4xf32>
    %8 = arith.addf %6, %7 : vector<64x4xf32>
    %c0_4 = arith.constant 0 : index
    %c0_5 = arith.constant 0 : index
    %9 = vector.load %arg3[%c0_4, %c0_5] : memref<1x4xf32, #tpu.memory_space<vmem>>, vector<1x4xf32>
    %10 = vector.broadcast %9 : vector<1x4xf32> to vector<64x4xf32>
    %11 = arith.mulf %8, %10 : vector<64x4xf32>
    %c0_6 = arith.constant 0 : index
    %c0_7 = arith.constant 0 : index
    %12 = vector.load %arg4[%c0_6, %c0_7] : memref<1x4xf32, #tpu.memory_space<vmem>>, vector<1x4xf32>
    %13 = vector.broadcast %12 : vector<1x4xf32> to vector<64x4xf32>
    %14 = arith.addf %11, %13 : vector<64x4xf32>
    %cst_8 = arith.constant 0.000000e+00 : f32
    %15 = vector.broadcast %cst_8 : f32 to vector<64x4xf32>
    %16 = arith.maximumf %14, %15 : vector<64x4xf32>
    %cst_9 = arith.constant 2.000000e+01 : f32
    %17 = vector.broadcast %cst_9 : f32 to vector<64x4xf32>
    %18 = arith.mulf %16, %17 : vector<64x4xf32>
    %19 = math.roundeven %18 : vector<64x4xf32>
    %cst_10 = arith.constant -1.280000e+02 : f32
    %cst_11 = arith.constant 1.270000e+02 : f32
    %20 = vector.broadcast %cst_10 : f32 to vector<64x4xf32>
    %21 = arith.maximumf %20, %19 : vector<64x4xf32>
    %22 = vector.broadcast %cst_11 : f32 to vector<64x4xf32>
    %23 = arith.minimumf %22, %21 : vector<64x4xf32>
    %24 = arith.truncf %23 : vector<64x4xf32> to vector<64x4xbf16>
    %c0_12 = arith.constant 0 : index
    %c0_13 = arith.constant 0 : index
    %25 = vector.load %arg5[%c0_12, %c0_13] : memref<64x4xbf16, #tpu.memory_space<vmem>>, vector<64x4xbf16>
    tpu.vector_store %arg5[%c0_12, %c0_13], %24 {strides = array<i32>} : memref<64x4xbf16, #tpu.memory_space<vmem>>, vector<64x4xbf16>,
    return
  }
  func.func @transform_0(%arg0: i32) -> (i32, i32) {
    %c0_i32 = arith.constant 0 : i32
    %c0_i32_0 = arith.constant 0 : i32
    return %arg0, %c0_i32 : i32, i32
  }
  func.func @transform_1(%arg0: i32) -> (i32, i32) {
    %c0_i32 = arith.constant 0 : i32
    %c0_i32_0 = arith.constant 0 : i32
    %c0_i32_1 = arith.constant 0 : i32
    return %c0_i32, %c0_i32_0 : i32, i32
  }
  func.func @transform_2(%arg0: i32) -> (i32, i32) {
    %c0_i32 = arith.constant 0 : i32
    %c0_i32_0 = arith.constant 0 : i32
    %c0_i32_1 = arith.constant 0 : i32
    return %c0_i32, %c0_i32_0 : i32, i32
  }
  func.func @transform_3(%arg0: i32) -> (i32, i32) {
    %c0_i32 = arith.constant 0 : i32
    %c0_i32_0 = arith.constant 0 : i32
    %c0_i32_1 = arith.constant 0 : i32
    return %c0_i32, %c0_i32_0 : i32, i32
  }
  func.func @transform_4(%arg0: i32) -> (i32, i32) {
    %c0_i32 = arith.constant 0 : i32
    %c0_i32_0 = arith.constant 0 : i32
    return %arg0, %c0_i32 : i32, i32
  }
}

</mosaic_0001>

<llo_original>
// kernel: tpu_custom_call.1
$region0: #{tpu_custom_call.1}
  #allocation0 [shape = 'u32[]', space=smem, size = 0x4, offset = 0x4, fixed_abs, tag = 'smem constant byte address 0x4 - core index']
  #allocation1 [shape = 'u32[144,128]{1,0:T(1,128)}', space=vmem, size = 0x12000, scoped, tag = 'internal scratch']
  %s0 = inlined_call_operand.vmem [shape: f32[128,8], index: 0, kind: input, shape index: {}]
  %s1 = inlined_call_operand.vmem [shape: bf16[8,4], index: 1, kind: input, shape index: {}]
  %s2 = inlined_call_operand.vmem [shape: f32[1,4], index: 2, kind: input, shape index: {}]
  %s3 = inlined_call_operand.vmem [shape: f32[1,4], index: 3, kind: input, shape index: {}]
  %s4 = inlined_call_operand.vmem [shape: bf16[128,4], index: 4, kind: output, shape index: {}]
  %s5 = sld [smem:[#allocation0]]
  $region49: #{tpu_custom_call.1} parent=0
    _
  %s7 = ssub.s32 1, %s5
  %s8 = scalar_select 0, %s7, %s5
  loop: start=0, step=1, limit=4
  $region2: #{tpu_custom_call.1} parent=0 // loop_pre_header
    _
  $region3: #{tpu_custom_call.1} parent=0 // loop_header
    %s10 = sphi 0, %s14
    %p11 = scmp.ge.s32.totalorder %s10, 4
    %s20 = sphi 0, %s22
    %s23 = sphi 0, %s20
    %s24 = sphi 0, %s23
    %s40 = sphi 0, %s24
    %s44 = sphi 0, %s44
    %s46 = sphi 0, %s44
    %s47 = sphi 0, %s46
    %s61 = sphi 0, %s47
    %s65 = sphi 0, %s65
    %s67 = sphi 0, %s65
    %s68 = sphi 0, %s67
    %s82 = sphi 0, %s68
    %s86 = sphi 0, %s86
    %s88 = sphi 0, %s86
    %s89 = sphi 0, %s88
    %s103 = sphi 0, %s89
    %s109 = sphi 0, %s111
    %s112 = sphi 0, %s109
    %s113 = sphi 0, %s112
    %s129 = sphi 0, %s113
  $region4: #{tpu_custom_call.1} parent=0 // loop_header_branch
    %13 = sbr.rel (%p11) target = $region8
  $region5: #{tpu_custom_call.1} parent=0 // loop_body
    %s15 = ssub.s32 %s10, 1
    %s16 = ssub.s32 %s10, 2
    %s17 = sadd.s32 %s10, 1
    %s18 = ssub.s32 %s10, %s17
    %p19 = scmp.eq.s32.totalorder %s18, 0
    %s21 = sadd.s32 %s20, 1
    %s22 = scalar_select %p19, %s20, %s21
    %p25 = pneg %p19
    %p26 = scmp.eq.s32.totalorder %s10, 1
    %p27 = por %p25, %p26
    %p28 = scmp.ne.s32.totalorder %s20, %s23
    %p29 = scmp.eq.s32.totalorder %s10, 0
    %p30 = por %p28, %p29
    %p31 = scmp.ne.s32.totalorder %s20, %s23
    %p32 = scmp.eq.s32.totalorder %s15, 1
    %p33 = por %p31, %p32
    %p34 = scmp.ne.s32.totalorder %s23, %s24
    %p35 = scmp.eq.s32.totalorder %s15, 0
    %p36 = por %p34, %p35
    %p37 = scmp.ne.s32.totalorder %s23, %s24
    %p38 = scmp.eq.s32.totalorder %s16, 1
    %p39 = por %p37, %p38
    %p41 = scmp.ne.s32.totalorder %s24, %s40
    %p42 = scmp.eq.s32.totalorder %s16, 0
    %p43 = por %p41, %p42
    %s45 = sadd.s32 %s44, 1
    %p48 = scmp.eq.s32.totalorder %s10, 1
    %p49 = scmp.ne.s32.totalorder %s44, %s46
    %p50 = scmp.eq.s32.totalorder %s10, 0
    %p51 = por %p49, %p50
    %p52 = scmp.ne.s32.totalorder %s44, %s46
    %p53 = scmp.eq.s32.totalorder %s15, 1
    %p54 = por %p52, %p53
    %p55 = scmp.ne.s32.totalorder %s46, %s47
    %p56 = scmp.eq.s32.totalorder %s15, 0
    %p57 = por %p55, %p56
    %p58 = scmp.ne.s32.totalorder %s46, %s47
    %p59 = scmp.eq.s32.totalorder %s16, 1
    %p60 = por %p58, %p59
    %p62 = scmp.ne.s32.totalorder %s47, %s61
    %p63 = scmp.eq.s32.totalorder %s16, 0
    %p64 = por %p62, %p63
    %s66 = sadd.s32 %s65, 1
    %p69 = scmp.eq.s32.totalorder %s10, 1
    %p70 = scmp.ne.s32.totalorder %s65, %s67
    %p71 = scmp.eq.s32.totalorder %s10, 0
    %p72 = por %p70, %p71
    %p73 = scmp.ne.s32.totalorder %s65, %s67
    %p74 = scmp.eq.s32.totalorder %s15, 1
    %p75 = por %p73, %p74
    %p76 = scmp.ne.s32.totalorder %s67, %s68
    %p77 = scmp.eq.s32.totalorder %s15, 0
    %p78 = por %p76, %p77
    %p79 = scmp.ne.s32.totalorder %s67, %s68
    %p80 = scmp.eq.s32.totalorder %s16, 1
    %p81 = por %p79, %p80
    %p83 = scmp.ne.s32.totalorder %s68, %s82
    %p84 = scmp.eq.s32.totalorder %s16, 0
    %p85 = por %p83, %p84
    %s87 = sadd.s32 %s86, 1
    %p90 = scmp.eq.s32.totalorder %s10, 1
    %p91 = scmp.ne.s32.totalorder %s86, %s88
    %p92 = scmp.eq.s32.totalorder %s10, 0
    %p93 = por %p91, %p92
    %p94 = scmp.ne.s32.totalorder %s86, %s88
    %p95 = scmp.eq.s32.totalorder %s15, 1
    %p96 = por %p94, %p95
    %p97 = scmp.ne.s32.totalorder %s88, %s89
    %p98 = scmp.eq.s32.totalorder %s15, 0
    %p99 = por %p97, %p98
    %p100 = scmp.ne.s32.totalorder %s88, %s89
    %p101 = scmp.eq.s32.totalorder %s16, 1
    %p102 = por %p100, %p101
    %p104 = scmp.ne.s32.totalorder %s89, %s103
    %p105 = scmp.eq.s32.totalorder %s16, 0
    %p106 = por %p104, %p105
    %s107 = ssub.s32 %s10, %s17
    %p108 = scmp.eq.s32.totalorder %s107, 0
    %s110 = sadd.s32 %s109, 1
    %s111 = scalar_select %p108, %s109, %s110
    %p114 = pneg %p108
    %p115 = scmp.eq.s32.totalorder %s10, 1
    %p116 = por %p114, %p115
    %p117 = scmp.ne.s32.totalorder %s109, %s112
    %p118 = scmp.eq.s32.totalorder %s10, 0
    %p119 = por %p117, %p118
    %p120 = scmp.ne.s32.totalorder %s109, %s112
    %p121 = scmp.eq.s32.totalorder %s15, 1
    %p122 = por %p120, %p121
    %p123 = scmp.ne.s32.totalorder %s112, %s113
    %p124 = scmp.eq.s32.totalorder %s15, 0
    %p125 = por %p123, %p124
    %p126 = scmp.ne.s32.totalorder %s112, %s113
    %p127 = scmp.eq.s32.totalorder %s16, 1
    %p128 = por %p126, %p127
    %p130 = scmp.ne.s32.totalorder %s113, %s129
    %p131 = scmp.eq.s32.totalorder %s16, 0
    %p132 = por %p130, %p131
    %p133 = scmp.le.s32.totalorder 1, %s10
    %p134 = scmp.lt.s32.totalorder %s10, 3
    %p135 = pnand %p133, %p134
    %p136 = pneg %p135
    // Predicated region
    $region9: #{tpu_custom_call.1} parent=5 // pred_check
      _
    $region10: #{tpu_custom_call.1} parent=5 // pred_check_branch
      %138 = sbr.rel (%p135) target = $region12
    $region11: #{tpu_custom_call.1} parent=5 // pred_region
      %s139 = ssub.s32 %s10, 1
      // Predicated region
      $region13: #{tpu_custom_call.1} parent=11 // pred_check
        %p140 = pneg %p57
      $region14: #{tpu_custom_call.1} parent=11 // pred_check_branch
        %142 = sbr.rel (%p140) target = $region16
      $region15: #{tpu_custom_call.1} parent=11 // pred_region
        _
      $region16: #{tpu_custom_call.1} parent=11 // pred_fallthru
        _
      // Predicated region
      $region17: #{tpu_custom_call.1} parent=11 // pred_check
        %p143 = pneg %p78
      $region18: #{tpu_custom_call.1} parent=11 // pred_check_branch
        %145 = sbr.rel (%p143) target = $region20
      $region19: #{tpu_custom_call.1} parent=11 // pred_region
        _
      $region20: #{tpu_custom_call.1} parent=11 // pred_fallthru
        _
      // Predicated region
      $region21: #{tpu_custom_call.1} parent=11 // pred_check
        %p146 = pneg %p99
      $region22: #{tpu_custom_call.1} parent=11 // pred_check_branch
        %148 = sbr.rel (%p146) target = $region24
      $region23: #{tpu_custom_call.1} parent=11 // pred_region
        _
      $region24: #{tpu_custom_call.1} parent=11 // pred_fallthru
        _
    $region12: #{tpu_custom_call.1} parent=5 // pred_fallthru
      _
    %p149 = scmp.lt.s32.totalorder %s10, 2
    // Predicated region
    $region25: #{tpu_custom_call.1} parent=5 // pred_check
      %p150 = pneg %p149
    $region26: #{tpu_custom_call.1} parent=5 // pred_check_branch
      %152 = sbr.rel (%p150) target = $region28
    $region27: #{tpu_custom_call.1} parent=5 // pred_region
      // Predicated region
      $region29: #{tpu_custom_call.1} parent=27 // pred_check
        %p153 = pneg %p30
      $region30: #{tpu_custom_call.1} parent=27 // pred_check_branch
        %155 = sbr.rel (%p153) target = $region32
      $region31: #{tpu_custom_call.1} parent=27 // pred_region
        %s156 = smul.u32 8, %s10
        %p157 = scmp.lt.s32.totalorder %s156, 15
        %s158 = scalar_select %p157, %s156, 15
        %s159 = smul.addr %s158, 8
        %s160 = scalar_lea.vmem %s0, %s159
        %s161 = smul.u32 8, %s10
      $region32: #{tpu_custom_call.1} parent=27 // pred_fallthru
        _
    $region28: #{tpu_custom_call.1} parent=5 // pred_fallthru
      _
    %p162 = scmp.le.s32.totalorder 1, %s10
    %p163 = scmp.lt.s32.totalorder %s10, 3
    %p164 = pnand %p162, %p163
    %p165 = pneg %p164
    // Predicated region
    $region33: #{tpu_custom_call.1} parent=5 // pred_check
      _
    $region34: #{tpu_custom_call.1} parent=5 // pred_check_branch
      %167 = sbr.rel (%p164) target = $region36
    $region35: #{tpu_custom_call.1} parent=5 // pred_region
      %s168 = ssub.s32 %s10, 1
      %s169 = smul.u32 8, %s15
      %p170 = scmp.lt.s32.totalorder %s169, 15
      %s171 = scalar_select %p170, %s169, 15
      %s172 = smul.addr %s171, 8
      %s173 = scalar_lea.vmem %s0, %s172
      %p174 = pneg %p36
      %p175 = pneg %p33
      %p176 = pneg %p57
      %p177 = pneg %p54
      %p178 = pneg %p78
      %p179 = pneg %p75
      %p180 = pneg %p99
      %p181 = pneg %p96
      %p182 = pneg %p125
      %p183 = pneg %p122
      %s184 = smul.u32 8, %s15
      %p185 = scmp.lt.s32.totalorder %s184, 15
      %s186 = scalar_select %p185, %s184, 15
      %s187 = smul.addr %s186, 4
      %s188 = scalar_lea.vmem %s4, %s187
      %s189 = smul.u32 8, %s15
      %p190 = scmp.lt.s32.totalorder %s189, 15
      %s191 = scalar_select %p190, %s189, 15
      %s192 = smul.addr %s191, 8
      %s193 = scalar_lea.vmem %s0, %s192
      %s194 = smul.u32 8, %s15
      %s195 = smul.u32 8, %s15
      %p196 = scmp.lt.s32.totalorder %s195, 15
      %s197 = scalar_select %p196, %s195, 15
      %s198 = smul.addr %s197, 4
      %s199 = scalar_lea.vmem %s4, %s198
      %s200 = smul.u32 8, %s15
      %v202 = vld [vmem:[%s193] sm:$0xff]
      %v203 = vld [vmem:[%s193 + $0x8] sm:$0xff]
      %v204 = vld [vmem:[%s193 + $0x10] sm:$0xff]
      %v205 = vld [vmem:[%s193 + $0x18] sm:$0xff]
      %v206 = vld [vmem:[%s193 + $0x20] sm:$0xff]
      %v207 = vld [vmem:[%s193 + $0x28] sm:$0xff]
      %v208 = vld [vmem:[%s193 + $0x30] sm:$0xff]
      %v209 = vld [vmem:[%s193 + $0x38] sm:$0xff]
      %v210 = vpack.c.bf16 %v203, %v202
      %v211 = vpack.c.bf16 %v205, %v204
      %v212 = vpack.c.bf16 %v207, %v206
      %v213 = vpack.c.bf16 %v209, %v208
      %v214 = vunpack.c.l.bf16 %v210
      %v215 = vunpack.c.h.bf16 %v210
      %v216 = vunpack.c.l.bf16 %v211
      %v217 = vunpack.c.h.bf16 %v211
      %v218 = vunpack.c.l.bf16 %v212
      %v219 = vunpack.c.h.bf16 %v212
      %v220 = vunpack.c.l.bf16 %v213
      %v221 = vunpack.c.h.bf16 %v213
      %v222 = vsub.f32 %v202, %v214
      %v223 = vsub.f32 %v203, %v215
      %v224 = vsub.f32 %v204, %v216
      %v225 = vsub.f32 %v205, %v217
      %v226 = vsub.f32 %v206, %v218
      %v227 = vsub.f32 %v207, %v219
      %v228 = vsub.f32 %v208, %v220
      %v229 = vsub.f32 %v209, %v221
      %v230 = vpack.c.bf16 %v223, %v222
      %v231 = vpack.c.bf16 %v225, %v224
      %v232 = vpack.c.bf16 %v227, %v226
      %v233 = vpack.c.bf16 %v229, %v228
      %v234 = vld [vmem:[%s1] sm:$0xf]
      %vm235 = vcmask 64512
      %v237 = vsel %vm235, %v230, 0
      %v240 = vsel %vm235, %v231, 0
      %v243 = vsel %vm235, %v232, 0
      %v246 = vsel %vm235, %v233, 0
      %vm248 = vcmask 1043456
      %v250 = vsel %vm248, %v234, 0
      %252 = vmatprep.subr.bf16.mxu0 0
      %253 = vmatpush1.bf16.msra.mxu0 %v250
      %254 = vmatprep.subr.bf16.mxu0 0
      %255 = vmatpush1.bf16.msra.mxu0 0
      %256 = vmatprep.subr.bf16.mxu0 0
      %257 = vmatpush1.bf16.msra.mxu0 0
      %258 = vmatprep.subr.bf16.mxu0 0
      %259 = vmatpush1.bf16.msra.mxu0 0
      %260 = vmatprep.subr.bf16.mxu0 0
      %261 = vmatpush1.bf16.msra.mxu0 0
      %262 = vmatprep.subr.bf16.mxu0 0
      %263 = vmatpush1.bf16.msra.mxu0 0
      %264 = vmatprep.subr.bf16.mxu0 0
      %265 = vmatpush1.bf16.msra.mxu0 0
      %266 = vmatprep.subr.bf16.mxu0 0
      %267 = vmatpush1.bf16.msra.mxu0 0
      %268 = vmatprep.subr.bf16.mxu0 0
      %269 = vmatpush1.bf16.msra.mxu0 0
      %270 = vmatprep.subr.bf16.mxu0 0
      %271 = vmatpush1.bf16.msra.mxu0 0
      %272 = vmatprep.subr.bf16.mxu0 0
      %273 = vmatpush1.bf16.msra.mxu0 0
      %274 = vmatprep.subr.bf16.mxu0 0
      %275 = vmatpush1.bf16.msra.mxu0 0
      %276 = vmatprep.subr.bf16.mxu0 0
      %277 = vmatpush1.bf16.msra.mxu0 0
      %278 = vmatprep.subr.bf16.mxu0 0
      %279 = vmatpush1.bf16.msra.mxu0 0
      %280 = vmatprep.subr.bf16.mxu0 0
      %281 = vmatpush1.bf16.msra.mxu0 0
      %282 = vmatprep.subr.bf16.mxu0 0
      %283 = vmatpush1.bf16.msra.mxu0 0
      %284 = vmatprep.mubr.bf16.mxu0 0
      %285 = vmatmul.mubr.bf16.gmra.mrb[0].mxu0 %v237
      %v286 = vpop.f32.mrb[0].mxu0
      %v287 = vadd.f32 0.0, %v286
      %v288 = vpop.f32.mrb[0].mxu0
      %v289 = vpop.f32.mrb[0].mxu0
      %v290 = vadd.f32 0.0, %v289
      %v291 = vpop.f32.mrb[0].mxu0
      %292 = vmatprep.mubr.bf16.mxu0 0
      %293 = vmatmul.mubr.bf16.gmra.mrb[0].mxu0 %v240
      %v294 = vpop.f32.mrb[0].mxu0
      %v295 = vadd.f32 0.0, %v294
      %v296 = vpop.f32.mrb[0].mxu0
      %v297 = vpop.f32.mrb[0].mxu0
      %v298 = vadd.f32 0.0, %v297
      %v299 = vpop.f32.mrb[0].mxu0
      %300 = vmatprep.mubr.bf16.mxu0 0
      %301 = vmatmul.mubr.bf16.gmra.mrb[0].mxu0 %v243
      %v302 = vpop.f32.mrb[0].mxu0
      %v303 = vadd.f32 0.0, %v302
      %v304 = vpop.f32.mrb[0].mxu0
      %v305 = vpop.f32.mrb[0].mxu0
      %v306 = vadd.f32 0.0, %v305
      %v307 = vpop.f32.mrb[0].mxu0
      %308 = vmatprep.mubr.bf16.mxu0 0
      %309 = vmatmul.mubr.bf16.gmra.mrb[0].mxu0 %v246
      %v310 = vpop.f32.mrb[0].mxu0
      %v311 = vadd.f32 0.0, %v310
      %v312 = vpop.f32.mrb[0].mxu0
      %v313 = vpop.f32.mrb[0].mxu0
      %v314 = vadd.f32 0.0, %v313
      %v315 = vpop.f32.mrb[0].mxu0
      %316 = vdwg.mxu0
      %v318 = vsel %vm235, %v210, 0
      %v321 = vsel %vm235, %v211, 0
      %v324 = vsel %vm235, %v212, 0
      %v327 = vsel %vm235, %v213, 0
      %329 = vmatprep.subr.bf16.mxu0 0
      %330 = vmatpush1.bf16.msra.mxu0 %v250
      %331 = vmatprep.subr.bf16.mxu0 0
      %332 = vmatpush1.bf16.msra.mxu0 0
      %333 = vmatprep.subr.bf16.mxu0 0
      %334 = vmatpush1.bf16.msra.mxu0 0
      %335 = vmatprep.subr.bf16.mxu0 0
      %336 = vmatpush1.bf16.msra.mxu0 0
      %337 = vmatprep.subr.bf16.mxu0 0
      %338 = vmatpush1.bf16.msra.mxu0 0
      %339 = vmatprep.subr.bf16.mxu0 0
      %340 = vmatpush1.bf16.msra.mxu0 0
      %341 = vmatprep.subr.bf16.mxu0 0
      %342 = vmatpush1.bf16.msra.mxu0 0
      %343 = vmatprep.subr.bf16.mxu0 0
      %344 = vmatpush1.bf16.msra.mxu0 0
      %345 = vmatprep.subr.bf16.mxu0 0
      %346 = vmatpush1.bf16.msra.mxu0 0
      %347 = vmatprep.subr.bf16.mxu0 0
      %348 = vmatpush1.bf16.msra.mxu0 0
      %349 = vmatprep.subr.bf16.mxu0 0
      %350 = vmatpush1.bf16.msra.mxu0 0
      %351 = vmatprep.subr.bf16.mxu0 0
      %352 = vmatpush1.bf16.msra.mxu0 0
      %353 = vmatprep.subr.bf16.mxu0 0
      %354 = vmatpush1.bf16.msra.mxu0 0
      %355 = vmatprep.subr.bf16.mxu0 0
      %356 = vmatpush1.bf16.msra.mxu0 0
      %357 = vmatprep.subr.bf16.mxu0 0
      %358 = vmatpush1.bf16.msra.mxu0 0
      %359 = vmatprep.subr.bf16.mxu0 0
      %360 = vmatpush1.bf16.msra.mxu0 0
      %361 = vmatprep.mubr.bf16.mxu0 0
      %362 = vmatmul.mubr.bf16.gmra.mrb[0].mxu0 %v318
      %v363 = vpop.f32.mrb[0].mxu0
      %v364 = vadd.f32 %v287, %v363
      %v365 = vpop.f32.mrb[0].mxu0
      %v366 = vpop.f32.mrb[0].mxu0
      %v367 = vadd.f32 %v290, %v366
      %v368 = vpop.f32.mrb[0].mxu0
      %369 = vmatprep.mubr.bf16.mxu0 0
      %370 = vmatmul.mubr.bf16.gmra.mrb[0].mxu0 %v321
      %v371 = vpop.f32.mrb[0].mxu0
      %v372 = vadd.f32 %v295, %v371
      %v373 = vpop.f32.mrb[0].mxu0
      %v374 = vpop.f32.mrb[0].mxu0
      %v375 = vadd.f32 %v298, %v374
      %v376 = vpop.f32.mrb[0].mxu0
      %377 = vmatprep.mubr.bf16.mxu0 0
      %378 = vmatmul.mubr.bf16.gmra.mrb[0].mxu0 %v324
      %v379 = vpop.f32.mrb[0].mxu0
      %v380 = vadd.f32 %v303, %v379
      %v381 = vpop.f32.mrb[0].mxu0
      %v382 = vpop.f32.mrb[0].mxu0
      %v383 = vadd.f32 %v306, %v382
      %v384 = vpop.f32.mrb[0].mxu0
      %385 = vmatprep.mubr.bf16.mxu0 0
      %386 = vmatmul.mubr.bf16.gmra.mrb[0].mxu0 %v327
      %v387 = vpop.f32.mrb[0].mxu0
      %v388 = vadd.f32 %v311, %v387
      %v389 = vpop.f32.mrb[0].mxu0
      %v390 = vpop.f32.mrb[0].mxu0
      %v391 = vadd.f32 %v314, %v390
      %v392 = vpop.f32.mrb[0].mxu0
      %393 = vdwg.mxu0
      %v394 = vld [vmem:[%s2] sm:$0x1]
      %v396 = vlaneseq
      %v397 = vshrl.u32 %v396, 7
      %v398 = vsub.s32 0, %v397
      %v399 = vrot.slane %v394, %v398
      %v401 = vmul.f32 %v364, %v399
      %v402 = vmul.f32 %v367, %v399
      %v403 = vmul.f32 %v372, %v399
      %v404 = vmul.f32 %v375, %v399
      %v405 = vmul.f32 %v380, %v399
      %v406 = vmul.f32 %v383, %v399
      %v407 = vmul.f32 %v388, %v399
      %v408 = vmul.f32 %v391, %v399
      %v409 = vld [vmem:[%s3] sm:$0x1]
      %v411 = vlaneseq
      %v412 = vshrl.u32 %v411, 7
      %v413 = vsub.s32 0, %v412
      %v414 = vrot.slane %v409, %v413
      %v416 = vadd.f32 %v401, %v414
      %v417 = vadd.f32 %v402, %v414
      %v418 = vadd.f32 %v403, %v414
      %v419 = vadd.f32 %v404, %v414
      %v420 = vadd.f32 %v405, %v414
      %v421 = vadd.f32 %v406, %v414
      %v422 = vadd.f32 %v407, %v414
      %v423 = vadd.f32 %v408, %v414
      %v424 = vmax.f32 %v416, 0.0
      %v425 = vmax.f32 %v417, 0.0
      %v426 = vmax.f32 %v418, 0.0
      %v427 = vmax.f32 %v419, 0.0
      %v428 = vmax.f32 %v420, 0.0
      %v429 = vmax.f32 %v421, 0.0
      %v430 = vmax.f32 %v422, 0.0
      %v431 = vmax.f32 %v423, 0.0
      %v432 = vmul.f32 %v424, 20.0
      %v433 = vmul.f32 %v425, 20.0
      %v434 = vmul.f32 %v426, 20.0
      %v435 = vmul.f32 %v427, 20.0
      %v436 = vmul.f32 %v428, 20.0
      %v437 = vmul.f32 %v429, 20.0
      %v438 = vmul.f32 %v430, 20.0
      %v439 = vmul.f32 %v431, 20.0
      %v440 = vround.ne.pseudo %v432
      %v441 = vround.ne.pseudo %v433
      %v442 = vround.ne.pseudo %v434
      %v443 = vround.ne.pseudo %v435
      %v444 = vround.ne.pseudo %v436
      %v445 = vround.ne.pseudo %v437
      %v446 = vround.ne.pseudo %v438
      %v447 = vround.ne.pseudo %v439
      %v448 = vmax.f32 %v440, -128.0
      %v449 = vmax.f32 %v441, -128.0
      %v450 = vmax.f32 %v442, -128.0
      %v451 = vmax.f32 %v443, -128.0
      %v452 = vmax.f32 %v444, -128.0
      %v453 = vmax.f32 %v445, -128.0
      %v454 = vmax.f32 %v446, -128.0
      %v455 = vmax.f32 %v447, -128.0
      %v456 = vmin.f32 %v448, 127.0
      %v457 = vmin.f32 %v449, 127.0
      %v458 = vmin.f32 %v450, 127.0
      %v459 = vmin.f32 %v451, 127.0
      %v460 = vmin.f32 %v452, 127.0
      %v461 = vmin.f32 %v453, 127.0
      %v462 = vmin.f32 %v454, 127.0
      %v463 = vmin.f32 %v455, 127.0
      %v464 = vpack.c.bf16 %v457, %v456
      %v465 = vpack.c.bf16 %v459, %v458
      %v466 = vpack.c.bf16 %v461, %v460
      %v467 = vpack.c.bf16 %v463, %v462
      %v472 = vunpack.c.l.b16 %v464
      %v473 = vunpack.c.h.b16 %v464
      %v474 = vunpack.c.l.b16 %v465
      %v475 = vunpack.c.h.b16 %v465
      %v476 = vunpack.c.l.b16 %v466
      %v477 = vunpack.c.h.b16 %v466
      %v478 = vunpack.c.l.b16 %v467
      %v479 = vunpack.c.h.b16 %v467
      %v480 = vpack.c.b16 %v472, %v472
      %v481 = vpack.c.b16 %v473, %v473
      %v482 = vpack.c.b16 %v474, %v474
      %v483 = vpack.c.b16 %v475, %v475
      %v484 = vpack.c.b16 %v476, %v476
      %v485 = vpack.c.b16 %v477, %v477
      %v486 = vpack.c.b16 %v478, %v478
      %v487 = vpack.c.b16 %v479, %v479
      %vm496 = vcmask 27648
      %497 = vst.msk [vmem:[%s199] sm:$0xf] %vm496, %v480
      %498 = vst.msk [vmem:[%s199 + $0x4] sm:$0xf] %vm496, %v481
      %499 = vst.msk [vmem:[%s199 + $0x8] sm:$0xf] %vm496, %v482
      %500 = vst.msk [vmem:[%s199 + $0xc] sm:$0xf] %vm496, %v483
      %501 = vst.msk [vmem:[%s199 + $0x10] sm:$0xf] %vm496, %v484
      %502 = vst.msk [vmem:[%s199 + $0x14] sm:$0xf] %vm496, %v485
      %503 = vst.msk [vmem:[%s199 + $0x18] sm:$0xf] %vm496, %v486
      %504 = vst.msk [vmem:[%s199 + $0x1c] sm:$0xf] %vm496, %v487
      %s505 = smul.u32 8, %s15
      %p506 = scmp.lt.s32.totalorder %s505, 15
      %s507 = scalar_select %p506, %s505, 15
      %s508 = smul.addr %s507, 4
      %s509 = scalar_lea.vmem %s4, %s508
      // Predicated region
      $region37: #{tpu_custom_call.1} parent=35 // pred_check
        %p510 = pneg %p122
      $region38: #{tpu_custom_call.1} parent=35 // pred_check_branch
        %512 = sbr.rel (%p510) target = $region40
      $region39: #{tpu_custom_call.1} parent=35 // pred_region
        %s513 = smul.u32 8, %s15
      $region40: #{tpu_custom_call.1} parent=35 // pred_fallthru
        _
    $region36: #{tpu_custom_call.1} parent=5 // pred_fallthru
      _
    %p514 = scmp.le.s32.totalorder 2, %s10
    // Predicated region
    $region41: #{tpu_custom_call.1} parent=5 // pred_check
      %p515 = pneg %p514
    $region42: #{tpu_custom_call.1} parent=5 // pred_check_branch
      %517 = sbr.rel (%p515) target = $region44
    $region43: #{tpu_custom_call.1} parent=5 // pred_region
      %s518 = ssub.s32 %s10, 2
      // Predicated region
      $region45: #{tpu_custom_call.1} parent=43 // pred_check
        %p519 = pneg %p128
      $region46: #{tpu_custom_call.1} parent=43 // pred_check_branch
        %521 = sbr.rel (%p519) target = $region48
      $region47: #{tpu_custom_call.1} parent=43 // pred_region
        %s522 = smul.u32 8, %s16
        %p523 = scmp.lt.s32.totalorder %s522, 15
        %s524 = scalar_select %p523, %s522, 15
        %s525 = smul.addr %s524, 4
        %s526 = scalar_lea.vmem %s4, %s525
      $region48: #{tpu_custom_call.1} parent=43 // pred_fallthru
        _
    $region44: #{tpu_custom_call.1} parent=5 // pred_fallthru
      _
  $region6: #{tpu_custom_call.1} parent=0 // loop_footer
    %s14 = sadd.s32 1, %s10
  $region7: #{tpu_custom_call.1} parent=0 // loop_footer_branch
    %9 = sbr.rel target = $region3
  $region8: #{tpu_custom_call.1} parent=0 // loop_exit
    _

</llo_original>
